<compile_context>
chip_gen: v7x
topology: tpu7x:2x2x1
jax: 0.10.0
libtpu: 0.0.40
codegen_flags: <defaults>
</compile_context>

<pallas_src>
import jax
import jax.numpy as jnp
from jax.experimental import pallas as pl
from jax.experimental.pallas import tpu as pltpu


def embed_kernel(ps_ref, w_ref, add_ref, o_ref):
    # ps_ref : (TB, N+1, K)  patch rows per image; row 0 is all-zero (cls slot)
    # w_ref  : (K, D)        patch-embedding weight (torch weight^T), compute dtype
    # add_ref: (N+1, D)      row 0: cls + pos[0]; rows 1..N: bias + pos[1:]   (f32)
    # o_ref  : (TB, N+1, D)  output block
    tb = ps_ref.shape[0]
    w = w_ref[...]          # hoisted: resident weight / add table loads
    add = add_ref[...]
    for j in range(tb):     # static unroll; tb is small (<= ~16)
        xe = jnp.dot(ps_ref[j], w, preferred_element_type=jnp.float32)  # (N+1, D) f32
        o_ref[j] = (xe + add).astype(o_ref.dtype)                       # aligned slab store


def _vmem_capacity_bytes():
    try:
        return int(pltpu.get_tpu_info().vmem_capacity_bytes)
    except Exception:
        return 64 << 20      # v7x per-TensorCore VMEM = smallest current generation


def _choose_tb(B, rows_per_img, per_img_bytes, resident_bytes, budget_bytes,
               target_rows=1536, min_steps=4):
    """Images fused per grid step: ~target_rows MXU rows/step, fits the VMEM
    budget, divides B, and keeps >= min_steps grid steps (software pipelining
    on v5e/v6e, both TensorCores busy on v7x)."""
    tb_rows = max(1, target_rows // max(rows_per_img, 1))
    avail = budget_bytes - resident_bytes
    tb_vmem = max(1, avail // max(per_img_bytes, 1))
    tb = int(min(B, tb_rows, tb_vmem))
    if B >= min_steps:
        tb = min(tb, B // min_steps)
    tb = max(1, tb)
    while B % tb:
        tb -= 1
    return tb


def embedding_layer(x, w, b, cls_emb, pos_emb, *, P,
                    compute_dtype=jnp.bfloat16, out_dtype=None, tb=None):
    """x: (B, C, W, H).  w: (K, D) (= torch patch_emb.weight^T), b: (D,),
    cls_emb: (1, D) or (D,), pos_emb: (N+1, D).  Returns (B, N+1, D)."""
    B, C, W, H = x.shape
    if W % P or H % P:
        raise ValueError("`W` and `H` must be divisible by `P`")
    nw, nh = W // P, H // P
    N = nw * nh
    K = C * P * P
    D = w.shape[1]
    assert w.shape == (K, D)
    assert pos_emb.shape == (N + 1, D)
    out_dtype = x.dtype if out_dtype is None else out_dtype
    N1 = N + 1

    # Patchify: 'b c (nw p1) (nh p2) -> b (nw nh) (c p1 p2)', prepend one
    # all-zero row per image (class-token slot of the fused matmul), cast once
    # to the compute dtype.  Under jit XLA fuses this into one pass over x.
    ps = x.reshape(B, C, nw, P, nh, P).transpose(0, 2, 4, 1, 3, 5).reshape(B, N, K)
    ps = jnp.pad(ps, ((0, 0), (1, 0), (0, 0))).astype(compute_dtype)      # (B, N+1, K)
    w_c = w.astype(compute_dtype)

    # Row-wise add table (f32): row 0 = cls + pos[0]; rows 1..N = bias + pos[1:].
    b_row = jnp.reshape(b, (1, D)).astype(jnp.float32)
    cls_row = jnp.reshape(cls_emb, (1, D)).astype(jnp.float32)
    pos_f32 = pos_emb.astype(jnp.float32)
    add_tbl = jnp.concatenate([cls_row + pos_f32[0:1], b_row + pos_f32[1:]], axis=0)

    in_sz = jnp.dtype(compute_dtype).itemsize
    out_sz = jnp.dtype(out_dtype).itemsize

    # --- VMEM-aware choice of TB + explicit scoped-VMEM limit (v5e/v6e/v7x). ---
    vmem_cap = _vmem_capacity_bytes()
    budget = (vmem_cap * 5) // 8                        # headroom for Mosaic internals
    resident = (2 * (K * D * in_sz + N1 * D * 4)        # w + add (double-buffered)
                + N1 * D * 4                            # one image's live f32 intermediate
                + (4 << 20))                            # internal-scratch margin
    per_img = 2 * N1 * (K * in_sz + D * out_sz)         # double-buffered ps + out blocks
    TB = tb if tb is not None else _choose_tb(B, N1, per_img, resident, budget)
    assert B % TB == 0
    grid = (B // TB,)
    vmem_limit = int(min(max(resident + TB * per_img + (8 << 20), 32 << 20),
                         (vmem_cap * 7) // 8))

    flops = 2 * B * N1 * K * D
    bytes_accessed = (ps.size * in_sz + w_c.size * in_sz
                      + add_tbl.size * 4 + B * N1 * D * out_sz)

    return pl.pallas_call(
        embed_kernel,
        out_shape=jax.ShapeDtypeStruct((B, N1, D), out_dtype),
        grid_spec=pltpu.PrefetchScalarGridSpec(
            num_scalar_prefetch=0,
            grid=grid,
            in_specs=[
                pl.BlockSpec((TB, N1, K), lambda i: (i, 0, 0)),
                pl.BlockSpec((K, D), lambda i: (0, 0)),
                pl.BlockSpec((N1, D), lambda i: (0, 0)),
            ],
            out_specs=pl.BlockSpec((TB, N1, D), lambda i: (i, 0, 0)),
        ),
        compiler_params=pltpu.CompilerParams(
            dimension_semantics=("parallel",),
            vmem_limit_bytes=vmem_limit,
        ),
        cost_estimate=pl.CostEstimate(
            flops=flops, transcendentals=0, bytes_accessed=bytes_accessed),
    )(ps, w_c, add_tbl)


def reference(x, w, b, cls_emb, pos_emb, *, P):
    B, C, W, H = x.shape
    nw, nh = W // P, H // P
    N = nw * nh
    K = C * P * P
    D = w.shape[1]
    ps = x.reshape(B, C, nw, P, nh, P).transpose(0, 2, 4, 1, 3, 5).reshape(B, N, K)
    xe = ps @ w + jnp.reshape(b, (1, 1, D))
    xc = jnp.broadcast_to(jnp.reshape(cls_emb, (1, 1, D)), (B, 1, D))
    return jnp.concatenate([xc, xe], axis=1) + pos_emb[None]


if __name__ == "__main__":
    # Small shapes consistent with the module; B=8 exercises TB>1 batch fusion
    # while keeping a 4-step grid (pipelining / both v7x TensorCores).
    B, C, W, H = 8, 4, 16, 16
    P = 4
    D = 32
    N = (W // P) * (H // P)          # 16
    K = C * P * P                    # 64

    key = jax.random.PRNGKey(0)
    kx, kw, kb, kc, kpos = jax.random.split(key, 5)

    x = jax.random.normal(kx, (B, C, W, H), dtype=jnp.float32)
    bound = float(K) ** -0.5         # nn.Linear-like init scale
    w = jax.random.uniform(kw, (K, D), minval=-bound, maxval=bound, dtype=jnp.float32)
    b = jax.random.uniform(kb, (D,), minval=-bound, maxval=bound, dtype=jnp.float32)
    cls_emb = 0.02 * jax.random.normal(kc, (1, D), dtype=jnp.float32)
    pos_emb = jax.random.normal(kpos, (N + 1, D), dtype=jnp.float32)

    ref = reference(x, w, b, cls_emb, pos_emb, P=P)

    run = jax.jit(embedding_layer,
                  static_argnames=("P", "compute_dtype", "out_dtype", "tb"))

    # f32 compute path: tight check against the XLA reference.
    out_f32 = jax.block_until_ready(
        run(x, w, b, cls_emb, pos_emb, P=P, compute_dtype=jnp.float32))
    assert out_f32.shape == (B, N + 1, D), out_f32.shape
    assert jnp.allclose(out_f32, ref, atol=1e-5, rtol=1e-5), \
        float(jnp.max(jnp.abs(out_f32 - ref)))

    # default bf16-matmul path with bf16 output (f32 accumulation in-kernel).
    out_bf16 = jax.block_until_ready(
        run(x, w, b, cls_emb, pos_emb, P=P, out_dtype=jnp.bfloat16))
    assert out_bf16.shape == (B, N + 1, D), out_bf16.shape
    assert jnp.allclose(out_bf16.astype(jnp.float32), ref, atol=5e-2, rtol=5e-2), \
        float(jnp.max(jnp.abs(out_bf16.astype(jnp.float32) - ref)))

    print("KERNEL_OK")
</pallas_src>

<mosaic_0001>
module attributes {stable_mosaic.version = 11 : i64} {
  func.func @embed_kernel(%arg0: i32, %arg1: memref<2x17x64xf32, #tpu.memory_space<vmem>>, %arg2: memref<64x32xf32, #tpu.memory_space<vmem>>, %arg3: memref<17x32xf32, #tpu.memory_space<vmem>>, %arg4: memref<2x17x32xf32, #tpu.memory_space<vmem>>) attributes {dimension_semantics = [#tpu.dimension_semantics<parallel>], iteration_bounds = array<i64: 4>, scalar_prefetch = 0 : i64, scratch_operands = 0 : i64, tpu.core_type = #tpu.core_type<tc>, window_params = [{transform_indices = @transform_0, window_bounds = array<i64: 2, 17, 64>}, {pipeline_mode = #tpu.pipeline_mode<synchronous>, transform_indices = @transform_1, window_bounds = array<i64: 64, 32>}, {pipeline_mode = #tpu.pipeline_mode<synchronous>, transform_indices = @transform_2, window_bounds = array<i64: 17, 32>}, {transform_indices = @transform_3, window_bounds = array<i64: 2, 17, 32>}]} {
    %c0 = arith.constant 0 : index
    %c0_0 = arith.constant 0 : index
    %0 = vector.load %arg2[%c0, %c0_0] : memref<64x32xf32, #tpu.memory_space<vmem>>, vector<64x32xf32>
    %c0_1 = arith.constant 0 : index
    %c0_2 = arith.constant 0 : index
    %1 = vector.load %arg3[%c0_1, %c0_2] : memref<17x32xf32, #tpu.memory_space<vmem>>, vector<17x32xf32>
    %c0_3 = arith.constant 0 : index
    %c0_4 = arith.constant 0 : index
    %c0_5 = arith.constant 0 : index
    %2 = vector.load %arg1[%c0_3, %c0_4, %c0_5] : memref<2x17x64xf32, #tpu.memory_space<vmem>>, vector<1x17x64xf32>
    %3 = vector.shape_cast %2 : vector<1x17x64xf32> to vector<17x64xf32>
    %cst = arith.constant dense<0.000000e+00> : vector<17x32xf32>
    %4 = tpu.matmul %3, %0, %cst {dimension_numbers = #tpu.dot_dimension_numbers<[1], [0], [0], [1], [0, 0, 1, 1], [], []>} : vector<17x64xf32>, vector<64x32xf32>, vector<17x32xf32> -> vector<17x32xf32>
    %5 = arith.addf %4, %1 : vector<17x32xf32>
    %c0_6 = arith.constant 0 : index
    %c0_7 = arith.constant 0 : index
    %c0_8 = arith.constant 0 : index
    %6 = vector.load %arg4[%c0_6, %c0_7, %c0_8] : memref<2x17x32xf32, #tpu.memory_space<vmem>>, vector<1x17x32xf32>
    %7 = vector.shape_cast %6 : vector<1x17x32xf32> to vector<17x32xf32>
    %8 = vector.shape_cast %5 : vector<17x32xf32> to vector<1x17x32xf32>
    tpu.vector_store %arg4[%c0_6, %c0_7, %c0_8], %8 {strides = array<i32>} : memref<2x17x32xf32, #tpu.memory_space<vmem>>, vector<1x17x32xf32>,
    %c1 = arith.constant 1 : index
    %c0_9 = arith.constant 0 : index
    %c0_10 = arith.constant 0 : index
    %9 = vector.load %arg1[%c1, %c0_9, %c0_10] : memref<2x17x64xf32, #tpu.memory_space<vmem>>, vector<1x17x64xf32>
    %10 = vector.shape_cast %9 : vector<1x17x64xf32> to vector<17x64xf32>
    %cst_11 = arith.constant dense<0.000000e+00> : vector<17x32xf32>
    %11 = tpu.matmul %10, %0, %cst_11 {dimension_numbers = #tpu.dot_dimension_numbers<[1], [0], [0], [1], [0, 0, 1, 1], [], []>} : vector<17x64xf32>, vector<64x32xf32>, vector<17x32xf32> -> vector<17x32xf32>
    %12 = arith.addf %11, %1 : vector<17x32xf32>
    %c1_12 = arith.constant 1 : index
    %c0_13 = arith.constant 0 : index
    %c0_14 = arith.constant 0 : index
    %13 = vector.load %arg4[%c1_12, %c0_13, %c0_14] : memref<2x17x32xf32, #tpu.memory_space<vmem>>, vector<1x17x32xf32>
    %14 = vector.shape_cast %13 : vector<1x17x32xf32> to vector<17x32xf32>
    %15 = vector.shape_cast %12 : vector<17x32xf32> to vector<1x17x32xf32>
    tpu.vector_store %arg4[%c1_12, %c0_13, %c0_14], %15 {strides = array<i32>} : memref<2x17x32xf32, #tpu.memory_space<vmem>>, vector<1x17x32xf32>,
    return
  }
  func.func @transform_0(%arg0: i32) -> (i32, i32, i32) {
    %c0_i32 = arith.constant 0 : i32
    %c0_i32_0 = arith.constant 0 : i32
    %c0_i32_1 = arith.constant 0 : i32
    return %arg0, %c0_i32, %c0_i32_0 : i32, i32, i32
  }
  func.func @transform_1(%arg0: i32) -> (i32, i32) {
    %c0_i32 = arith.constant 0 : i32
    %c0_i32_0 = arith.constant 0 : i32
    %c0_i32_1 = arith.constant 0 : i32
    return %c0_i32, %c0_i32_0 : i32, i32
  }
  func.func @transform_2(%arg0: i32) -> (i32, i32) {
    %c0_i32 = arith.constant 0 : i32
    %c0_i32_0 = arith.constant 0 : i32
    %c0_i32_1 = arith.constant 0 : i32
    return %c0_i32, %c0_i32_0 : i32, i32
  }
  func.func @transform_3(%arg0: i32) -> (i32, i32, i32) {
    %c0_i32 = arith.constant 0 : i32
    %c0_i32_0 = arith.constant 0 : i32
    %c0_i32_1 = arith.constant 0 : i32
    return %arg0, %c0_i32, %c0_i32_0 : i32, i32, i32
  }
}

</mosaic_0001>

<llo_original>
// kernel: embedding_layer.1
$region0: #{embedding_layer.1}
  #allocation0 [shape = 'u32[]', space=smem, size = 0x4, offset = 0x4, fixed_abs, tag = 'smem constant byte address 0x4 - core index']
  #allocation1 [shape = 'u32[144,128]{1,0:T(1,128)}', space=vmem, size = 0x12000, scoped, tag = 'internal scratch']
  %s0 = inlined_call_operand.vmem [shape: f32[8,17,64], index: 0, kind: input, shape index: {}]
  %s1 = inlined_call_operand.vmem [shape: f32[64,32], index: 1, kind: input, shape index: {}]
  %s2 = inlined_call_operand.vmem [shape: f32[17,32], index: 2, kind: input, shape index: {}]
  %s3 = inlined_call_operand.vmem [shape: f32[8,17,32], index: 3, kind: output, shape index: {}]
  %s4 = sld [smem:[#allocation0]]
  $region45: #{embedding_layer.1} parent=0
    _
  %s6 = ssub.s32 1, %s4
  %s7 = scalar_select 0, %s6, %s4
  loop: start=0, step=1, limit=6
  $region2: #{embedding_layer.1} parent=0 // loop_pre_header
    _
  $region3: #{embedding_layer.1} parent=0 // loop_header
    %s9 = sphi 0, %s13
    %p10 = scmp.ge.s32.totalorder %s9, 6
    %s19 = sphi 0, %s21
    %s22 = sphi 0, %s19
    %s23 = sphi 0, %s22
    %s39 = sphi 0, %s23
    %s43 = sphi 0, %s43
    %s45 = sphi 0, %s43
    %s46 = sphi 0, %s45
    %s60 = sphi 0, %s46
    %s64 = sphi 0, %s64
    %s66 = sphi 0, %s64
    %s67 = sphi 0, %s66
    %s81 = sphi 0, %s67
    %s87 = sphi 0, %s89
    %s90 = sphi 0, %s87
    %s91 = sphi 0, %s90
    %s107 = sphi 0, %s91
  $region4: #{embedding_layer.1} parent=0 // loop_header_branch
    %12 = sbr.rel (%p10) target = $region8
  $region5: #{embedding_layer.1} parent=0 // loop_body
    %s14 = ssub.s32 %s9, 1
    %s15 = ssub.s32 %s9, 2
    %s16 = sadd.s32 %s9, 1
    %s17 = ssub.s32 %s9, %s16
    %p18 = scmp.eq.s32.totalorder %s17, 0
    %s20 = sadd.s32 %s19, 1
    %s21 = scalar_select %p18, %s19, %s20
    %p24 = pneg %p18
    %p25 = scmp.eq.s32.totalorder %s9, 3
    %p26 = por %p24, %p25
    %p27 = scmp.ne.s32.totalorder %s19, %s22
    %p28 = scmp.eq.s32.totalorder %s9, 0
    %p29 = por %p27, %p28
    %p30 = scmp.ne.s32.totalorder %s19, %s22
    %p31 = scmp.eq.s32.totalorder %s14, 3
    %p32 = por %p30, %p31
    %p33 = scmp.ne.s32.totalorder %s22, %s23
    %p34 = scmp.eq.s32.totalorder %s14, 0
    %p35 = por %p33, %p34
    %p36 = scmp.ne.s32.totalorder %s22, %s23
    %p37 = scmp.eq.s32.totalorder %s15, 3
    %p38 = por %p36, %p37
    %p40 = scmp.ne.s32.totalorder %s23, %s39
    %p41 = scmp.eq.s32.totalorder %s15, 0
    %p42 = por %p40, %p41
    %s44 = sadd.s32 %s43, 1
    %p47 = scmp.eq.s32.totalorder %s9, 3
    %p48 = scmp.ne.s32.totalorder %s43, %s45
    %p49 = scmp.eq.s32.totalorder %s9, 0
    %p50 = por %p48, %p49
    %p51 = scmp.ne.s32.totalorder %s43, %s45
    %p52 = scmp.eq.s32.totalorder %s14, 3
    %p53 = por %p51, %p52
    %p54 = scmp.ne.s32.totalorder %s45, %s46
    %p55 = scmp.eq.s32.totalorder %s14, 0
    %p56 = por %p54, %p55
    %p57 = scmp.ne.s32.totalorder %s45, %s46
    %p58 = scmp.eq.s32.totalorder %s15, 3
    %p59 = por %p57, %p58
    %p61 = scmp.ne.s32.totalorder %s46, %s60
    %p62 = scmp.eq.s32.totalorder %s15, 0
    %p63 = por %p61, %p62
    %s65 = sadd.s32 %s64, 1
    %p68 = scmp.eq.s32.totalorder %s9, 3
    %p69 = scmp.ne.s32.totalorder %s64, %s66
    %p70 = scmp.eq.s32.totalorder %s9, 0
    %p71 = por %p69, %p70
    %p72 = scmp.ne.s32.totalorder %s64, %s66
    %p73 = scmp.eq.s32.totalorder %s14, 3
    %p74 = por %p72, %p73
    %p75 = scmp.ne.s32.totalorder %s66, %s67
    %p76 = scmp.eq.s32.totalorder %s14, 0
    %p77 = por %p75, %p76
    %p78 = scmp.ne.s32.totalorder %s66, %s67
    %p79 = scmp.eq.s32.totalorder %s15, 3
    %p80 = por %p78, %p79
    %p82 = scmp.ne.s32.totalorder %s67, %s81
    %p83 = scmp.eq.s32.totalorder %s15, 0
    %p84 = por %p82, %p83
    %s85 = ssub.s32 %s9, %s16
    %p86 = scmp.eq.s32.totalorder %s85, 0
    %s88 = sadd.s32 %s87, 1
    %s89 = scalar_select %p86, %s87, %s88
    %p92 = pneg %p86
    %p93 = scmp.eq.s32.totalorder %s9, 3
    %p94 = por %p92, %p93
    %p95 = scmp.ne.s32.totalorder %s87, %s90
    %p96 = scmp.eq.s32.totalorder %s9, 0
    %p97 = por %p95, %p96
    %p98 = scmp.ne.s32.totalorder %s87, %s90
    %p99 = scmp.eq.s32.totalorder %s14, 3
    %p100 = por %p98, %p99
    %p101 = scmp.ne.s32.totalorder %s90, %s91
    %p102 = scmp.eq.s32.totalorder %s14, 0
    %p103 = por %p101, %p102
    %p104 = scmp.ne.s32.totalorder %s90, %s91
    %p105 = scmp.eq.s32.totalorder %s15, 3
    %p106 = por %p104, %p105
    %p108 = scmp.ne.s32.totalorder %s91, %s107
    %p109 = scmp.eq.s32.totalorder %s15, 0
    %p110 = por %p108, %p109
    %p111 = scmp.le.s32.totalorder 1, %s9
    %p112 = scmp.lt.s32.totalorder %s9, 5
    %p113 = pnand %p111, %p112
    %p114 = pneg %p113
    // Predicated region
    $region9: #{embedding_layer.1} parent=5 // pred_check
      _
    $region10: #{embedding_layer.1} parent=5 // pred_check_branch
      %116 = sbr.rel (%p113) target = $region12
    $region11: #{embedding_layer.1} parent=5 // pred_region
      %s117 = ssub.s32 %s9, 1
      // Predicated region
      $region13: #{embedding_layer.1} parent=11 // pred_check
        %p118 = pneg %p56
      $region14: #{embedding_layer.1} parent=11 // pred_check_branch
        %120 = sbr.rel (%p118) target = $region16
      $region15: #{embedding_layer.1} parent=11 // pred_region
        _
      $region16: #{embedding_layer.1} parent=11 // pred_fallthru
        _
      // Predicated region
      $region17: #{embedding_layer.1} parent=11 // pred_check
        %p121 = pneg %p77
      $region18: #{embedding_layer.1} parent=11 // pred_check_branch
        %123 = sbr.rel (%p121) target = $region20
      $region19: #{embedding_layer.1} parent=11 // pred_region
        _
      $region20: #{embedding_layer.1} parent=11 // pred_fallthru
        _
    $region12: #{embedding_layer.1} parent=5 // pred_fallthru
      _
    %p124 = scmp.lt.s32.totalorder %s9, 4
    // Predicated region
    $region21: #{embedding_layer.1} parent=5 // pred_check
      %p125 = pneg %p124
    $region22: #{embedding_layer.1} parent=5 // pred_check_branch
      %127 = sbr.rel (%p125) target = $region24
    $region23: #{embedding_layer.1} parent=5 // pred_region
      // Predicated region
      $region25: #{embedding_layer.1} parent=23 // pred_check
        %p128 = pneg %p29
      $region26: #{embedding_layer.1} parent=23 // pred_check_branch
        %130 = sbr.rel (%p128) target = $region28
      $region27: #{embedding_layer.1} parent=23 // pred_region
        %s131 = smul.u32 2, %s9
        %p132 = scmp.lt.s32.totalorder %s131, 7
        %s133 = scalar_select %p132, %s131, 7
        %s134 = smul.addr %s133, 3
        %s135 = smul.addr %s134, 8
        %s136 = scalar_lea.vmem %s0, %s135
        %s137 = smul.u32 2, %s9
      $region28: #{embedding_layer.1} parent=23 // pred_fallthru
        _
    $region24: #{embedding_layer.1} parent=5 // pred_fallthru
      _
    %p138 = scmp.le.s32.totalorder 1, %s9
    %p139 = scmp.lt.s32.totalorder %s9, 5
    %p140 = pnand %p138, %p139
    %p141 = pneg %p140
    // Predicated region
    $region29: #{embedding_layer.1} parent=5 // pred_check
      _
    $region30: #{embedding_layer.1} parent=5 // pred_check_branch
      %143 = sbr.rel (%p140) target = $region32
    $region31: #{embedding_layer.1} parent=5 // pred_region
      %s144 = ssub.s32 %s9, 1
      %s145 = smul.u32 2, %s14
      %p146 = scmp.lt.s32.totalorder %s145, 7
      %s147 = scalar_select %p146, %s145, 7
      %s148 = smul.addr %s147, 3
      %s149 = smul.addr %s148, 8
      %s150 = scalar_lea.vmem %s0, %s149
      %p151 = pneg %p35
      %p152 = pneg %p32
      %p153 = pneg %p56
      %p154 = pneg %p53
      %p155 = pneg %p77
      %p156 = pneg %p74
      %p157 = pneg %p103
      %p158 = pneg %p100
      %s159 = smul.u32 2, %s14
      %p160 = scmp.lt.s32.totalorder %s159, 7
      %s161 = scalar_select %p160, %s159, 7
      %s162 = smul.addr %s161, 3
      %s163 = smul.addr %s162, 8
      %s164 = scalar_lea.vmem %s3, %s163
      %s165 = smul.u32 2, %s14
      %p166 = scmp.lt.s32.totalorder %s165, 7
      %s167 = scalar_select %p166, %s165, 7
      %s168 = smul.addr %s167, 3
      %s169 = smul.addr %s168, 8
      %s170 = scalar_lea.vmem %s0, %s169
      %s171 = smul.u32 2, %s14
      %s172 = smul.u32 2, %s14
      %p173 = scmp.lt.s32.totalorder %s172, 7
      %s174 = scalar_select %p173, %s172, 7
      %s175 = smul.addr %s174, 3
      %s176 = smul.addr %s175, 8
      %s177 = scalar_lea.vmem %s3, %s176
      %s178 = smul.u32 2, %s14
      %v179 = vld [vmem:[%s1] sm:$0xff]
      %v180 = vld [vmem:[%s1 + $0x8] sm:$0xff]
      %v181 = vld [vmem:[%s1 + $0x10] sm:$0xff]
      %v182 = vld [vmem:[%s1 + $0x18] sm:$0xff]
      %v183 = vld [vmem:[%s1 + $0x20] sm:$0xff]
      %v184 = vld [vmem:[%s1 + $0x28] sm:$0xff]
      %v185 = vld [vmem:[%s1 + $0x30] sm:$0xff]
      %v186 = vld [vmem:[%s1 + $0x38] sm:$0xff]
      %v187 = vld [vmem:[%s2] sm:$0xff]
      %v188 = vld [vmem:[%s2 + $0x8] sm:$0xff]
      %v189 = vld [vmem:[%s2 + $0x10] sm:$0x1]
      %v190 = vld [vmem:[%s170] sm:$0xff]
      %v191 = vld [vmem:[%s170 + $0x8] sm:$0xff]
      %v192 = vld [vmem:[%s170 + $0x10] sm:$0x1]
      %vm193 = vcmask 523264
      %v195 = vsel %vm193, %v190, 0
      %v198 = vsel %vm193, %v191, 0
      %v201 = vsel %vm193, %v192, 0
      %203 = vmatprep.subr.mxu0 0.0
      %204 = vmatpush1.msra.mxu0 %v179
      %205 = vmatprep.subr.mxu0 0.0
      %206 = vmatpush1.msra.mxu0 %v180
      %207 = vmatprep.subr.mxu0 0.0
      %208 = vmatpush1.msra.mxu0 %v181
      %209 = vmatprep.subr.mxu0 0.0
      %210 = vmatpush1.msra.mxu0 %v182
      %211 = vmatprep.subr.mxu0 0.0
      %212 = vmatpush1.msra.mxu0 %v183
      %213 = vmatprep.subr.mxu0 0.0
      %214 = vmatpush1.msra.mxu0 %v184
      %215 = vmatprep.subr.mxu0 0.0
      %216 = vmatpush1.msra.mxu0 %v185
      %217 = vmatprep.subr.mxu0 0.0
      %218 = vmatpush1.msra.mxu0 %v186
      %219 = vmatprep.subr.mxu0 0.0
      %220 = vmatpush1.msra.mxu0 0.0
      %221 = vmatprep.subr.mxu0 0.0
      %222 = vmatpush1.msra.mxu0 0.0
      %223 = vmatprep.subr.mxu0 0.0
      %224 = vmatpush1.msra.mxu0 0.0
      %225 = vmatprep.subr.mxu0 0.0
      %226 = vmatpush1.msra.mxu0 0.0
      %227 = vmatprep.subr.mxu0 0.0
      %228 = vmatpush1.msra.mxu0 0.0
      %229 = vmatprep.subr.mxu0 0.0
      %230 = vmatpush1.msra.mxu0 0.0
      %231 = vmatprep.subr.mxu0 0.0
      %232 = vmatpush1.msra.mxu0 0.0
      %233 = vmatprep.subr.mxu0 0.0
      %234 = vmatpush1.msra.mxu0 0.0
      %235 = vmatprep.subr.mxu0 0.0
      %236 = vmatpush1.msra.mxu0 0.0
      %237 = vmatprep.subr.mxu0 0.0
      %238 = vmatpush1.msra.mxu0 0.0
      %239 = vmatprep.subr.mxu0 0.0
      %240 = vmatpush1.msra.mxu0 0.0
      %241 = vmatprep.subr.mxu0 0.0
      %242 = vmatpush1.msra.mxu0 0.0
      %243 = vmatprep.subr.mxu0 0.0
      %244 = vmatpush1.msra.mxu0 0.0
      %245 = vmatprep.subr.mxu0 0.0
      %246 = vmatpush1.msra.mxu0 0.0
      %247 = vmatprep.subr.mxu0 0.0
      %248 = vmatpush1.msra.mxu0 0.0
      %249 = vmatprep.subr.mxu0 0.0
      %250 = vmatpush1.msra.mxu0 0.0
      %251 = vmatprep.subr.mxu0 0.0
      %252 = vmatpush1.msra.mxu0 0.0
      %253 = vmatprep.subr.mxu0 0.0
      %254 = vmatpush1.msra.mxu0 0.0
      %255 = vmatprep.subr.mxu0 0.0
      %256 = vmatpush1.msra.mxu0 0.0
      %257 = vmatprep.subr.mxu0 0.0
      %258 = vmatpush1.msra.mxu0 0.0
      %259 = vmatprep.subr.mxu0 0.0
      %260 = vmatpush1.msra.mxu0 0.0
      %261 = vmatprep.subr.mxu0 0.0
      %262 = vmatpush1.msra.mxu0 0.0
      %263 = vmatprep.subr.mxu0 0.0
      %264 = vmatpush1.msra.mxu0 0.0
      %265 = vmatprep.subr.mxu0 0.0
      %266 = vmatpush1.msra.mxu0 0.0
      %267 = vmatprep.mubr.f32.mxu0 0.0
      %268 = vmatmul.mubr.f32.gmra.mrb[0].mxu0 %v195
      %v269 = vpop.f32.mrb[0].mxu0
      %v270 = vadd.f32 %v187, %v269
      %v271 = vpop.f32.mrb[0].mxu0
      %272 = vmatprep.mubr.f32.mxu0 0.0
      %273 = vmatmul.mubr.f32.gmra.mrb[0].mxu0 %v198
      %v274 = vpop.f32.mrb[0].mxu0
      %v275 = vadd.f32 %v188, %v274
      %v276 = vpop.f32.mrb[0].mxu0
      %277 = vmatprep.mubr.f32.mxu0 0.0
      %278 = vmatmul.mubr.f32.gmra.mrb[0].mxu0 %v201
      %v279 = vpop.f32.mrb[0].mxu0
      %v280 = vadd.f32 %v189, %v279
      %v281 = vpop.f32.mrb[0].mxu0
      %282 = vdwg.mxu0
      %vm283 = vcmask 261120
      %284 = vst.msk [vmem:[%s177] sm:$0xff] %vm283, %v270
      %285 = vst.msk [vmem:[%s177 + $0x8] sm:$0xff] %vm283, %v275
      %vm286 = vcmask 253952
      %287 = vst.msk [vmem:[%s177 + $0x10] sm:$0x1] %vm286, %v280
      %s288 = scalar_lea.vmem %s170, 24
      %v289 = vld [vmem:[%s288] sm:$0xff]
      %v290 = vld [vmem:[%s288 + $0x8] sm:$0xff]
      %v291 = vld [vmem:[%s288 + $0x10] sm:$0x1]
      %v293 = vsel %vm193, %v289, 0
      %v296 = vsel %vm193, %v290, 0
      %v299 = vsel %vm193, %v291, 0
      %301 = vmatprep.subr.mxu0 0.0
      %302 = vmatpush1.msra.mxu0 %v179
      %303 = vmatprep.subr.mxu0 0.0
      %304 = vmatpush1.msra.mxu0 %v180
      %305 = vmatprep.subr.mxu0 0.0
      %306 = vmatpush1.msra.mxu0 %v181
      %307 = vmatprep.subr.mxu0 0.0
      %308 = vmatpush1.msra.mxu0 %v182
      %309 = vmatprep.subr.mxu0 0.0
      %310 = vmatpush1.msra.mxu0 %v183
      %311 = vmatprep.subr.mxu0 0.0
      %312 = vmatpush1.msra.mxu0 %v184
      %313 = vmatprep.subr.mxu0 0.0
      %314 = vmatpush1.msra.mxu0 %v185
      %315 = vmatprep.subr.mxu0 0.0
      %316 = vmatpush1.msra.mxu0 %v186
      %317 = vmatprep.subr.mxu0 0.0
      %318 = vmatpush1.msra.mxu0 0.0
      %319 = vmatprep.subr.mxu0 0.0
      %320 = vmatpush1.msra.mxu0 0.0
      %321 = vmatprep.subr.mxu0 0.0
      %322 = vmatpush1.msra.mxu0 0.0
      %323 = vmatprep.subr.mxu0 0.0
      %324 = vmatpush1.msra.mxu0 0.0
      %325 = vmatprep.subr.mxu0 0.0
      %326 = vmatpush1.msra.mxu0 0.0
      %327 = vmatprep.subr.mxu0 0.0
      %328 = vmatpush1.msra.mxu0 0.0
      %329 = vmatprep.subr.mxu0 0.0
      %330 = vmatpush1.msra.mxu0 0.0
      %331 = vmatprep.subr.mxu0 0.0
      %332 = vmatpush1.msra.mxu0 0.0
      %333 = vmatprep.subr.mxu0 0.0
      %334 = vmatpush1.msra.mxu0 0.0
      %335 = vmatprep.subr.mxu0 0.0
      %336 = vmatpush1.msra.mxu0 0.0
      %337 = vmatprep.subr.mxu0 0.0
      %338 = vmatpush1.msra.mxu0 0.0
      %339 = vmatprep.subr.mxu0 0.0
      %340 = vmatpush1.msra.mxu0 0.0
      %341 = vmatprep.subr.mxu0 0.0
      %342 = vmatpush1.msra.mxu0 0.0
      %343 = vmatprep.subr.mxu0 0.0
      %344 = vmatpush1.msra.mxu0 0.0
      %345 = vmatprep.subr.mxu0 0.0
      %346 = vmatpush1.msra.mxu0 0.0
      %347 = vmatprep.subr.mxu0 0.0
      %348 = vmatpush1.msra.mxu0 0.0
      %349 = vmatprep.subr.mxu0 0.0
      %350 = vmatpush1.msra.mxu0 0.0
      %351 = vmatprep.subr.mxu0 0.0
      %352 = vmatpush1.msra.mxu0 0.0
      %353 = vmatprep.subr.mxu0 0.0
      %354 = vmatpush1.msra.mxu0 0.0
      %355 = vmatprep.subr.mxu0 0.0
      %356 = vmatpush1.msra.mxu0 0.0
      %357 = vmatprep.subr.mxu0 0.0
      %358 = vmatpush1.msra.mxu0 0.0
      %359 = vmatprep.subr.mxu0 0.0
      %360 = vmatpush1.msra.mxu0 0.0
      %361 = vmatprep.subr.mxu0 0.0
      %362 = vmatpush1.msra.mxu0 0.0
      %363 = vmatprep.subr.mxu0 0.0
      %364 = vmatpush1.msra.mxu0 0.0
      %365 = vmatprep.mubr.f32.mxu0 0.0
      %366 = vmatmul.mubr.f32.gmra.mrb[0].mxu0 %v293
      %v367 = vpop.f32.mrb[0].mxu0
      %v368 = vadd.f32 %v187, %v367
      %v369 = vpop.f32.mrb[0].mxu0
      %370 = vmatprep.mubr.f32.mxu0 0.0
      %371 = vmatmul.mubr.f32.gmra.mrb[0].mxu0 %v296
      %v372 = vpop.f32.mrb[0].mxu0
      %v373 = vadd.f32 %v188, %v372
      %v374 = vpop.f32.mrb[0].mxu0
      %375 = vmatprep.mubr.f32.mxu0 0.0
      %376 = vmatmul.mubr.f32.gmra.mrb[0].mxu0 %v299
      %v377 = vpop.f32.mrb[0].mxu0
      %v378 = vadd.f32 %v189, %v377
      %v379 = vpop.f32.mrb[0].mxu0
      %380 = vdwg.mxu0
      %s381 = scalar_lea.vmem %s177, 24
      %382 = vst.msk [vmem:[%s381] sm:$0xff] %vm283, %v368
      %383 = vst.msk [vmem:[%s381 + $0x8] sm:$0xff] %vm283, %v373
      %384 = vst.msk [vmem:[%s381 + $0x10] sm:$0x1] %vm286, %v378
      %s385 = smul.u32 2, %s14
      %p386 = scmp.lt.s32.totalorder %s385, 7
      %s387 = scalar_select %p386, %s385, 7
      %s388 = smul.addr %s387, 3
      %s389 = smul.addr %s388, 8
      %s390 = scalar_lea.vmem %s3, %s389
      // Predicated region
      $region33: #{embedding_layer.1} parent=31 // pred_check
        %p391 = pneg %p100
      $region34: #{embedding_layer.1} parent=31 // pred_check_branch
        %393 = sbr.rel (%p391) target = $region36
      $region35: #{embedding_layer.1} parent=31 // pred_region
        %s394 = smul.u32 2, %s14
      $region36: #{embedding_layer.1} parent=31 // pred_fallthru
        _
    $region32: #{embedding_layer.1} parent=5 // pred_fallthru
      _
    %p395 = scmp.le.s32.totalorder 2, %s9
    // Predicated region
    $region37: #{embedding_layer.1} parent=5 // pred_check
      %p396 = pneg %p395
    $region38: #{embedding_layer.1} parent=5 // pred_check_branch
      %398 = sbr.rel (%p396) target = $region40
    $region39: #{embedding_layer.1} parent=5 // pred_region
      %s399 = ssub.s32 %s9, 2
      // Predicated region
      $region41: #{embedding_layer.1} parent=39 // pred_check
        %p400 = pneg %p106
      $region42: #{embedding_layer.1} parent=39 // pred_check_branch
        %402 = sbr.rel (%p400) target = $region44
      $region43: #{embedding_layer.1} parent=39 // pred_region
        %s403 = smul.u32 2, %s15
        %p404 = scmp.lt.s32.totalorder %s403, 7
        %s405 = scalar_select %p404, %s403, 7
        %s406 = smul.addr %s405, 3
        %s407 = smul.addr %s406, 8
        %s408 = scalar_lea.vmem %s3, %s407
      $region44: #{embedding_layer.1} parent=39 // pred_fallthru
        _
    $region40: #{embedding_layer.1} parent=5 // pred_fallthru
      _
  $region6: #{embedding_layer.1} parent=0 // loop_footer
    %s13 = sadd.s32 1, %s9
  $region7: #{embedding_layer.1} parent=0 // loop_footer_branch
    %8 = sbr.rel target = $region3
  $region8: #{embedding_layer.1} parent=0 // loop_exit
    _

</llo_original>
